<compile_context>
chip_gen: v6e
topology: v6e:2x2x1
jax: 0.10.0
libtpu: 0.0.40
codegen_flags: <defaults>
</compile_context>

<pallas_src>
import jax
import jax.numpy as jnp
from jax.experimental import pallas as pl
from jax.experimental.pallas import tpu as pltpu


def _round_up(x, m):
    return (x + m - 1) // m * m


def _pick_tile_rows(rows, target):
    """Largest multiple of 8 that divides `rows` and is <= target."""
    t = max(8, min(target, rows))
    t -= t % 8
    while rows % t != 0:
        t -= 8
    return t


def _inpaint_kernel(w_ref, b_ref, img_ref, mask_ref, out_ref):
    # w_ref    : SMEM (4, 3)              1x1 conv weight ([r,g,b,mask] -> rgb)
    # b_ref    : SMEM (3,)                bias
    # img_ref  : VMEM (1, 3, tr, 128)     image tile, spatial on (sublane, lane)
    # mask_ref : VMEM (1, 1, tr, 128)     mask tile
    # out_ref  : VMEM (1, 3, tr, 128)     inpainted tile
    m = mask_ref[0, 0]                    # (tr, 128) f32
    one_minus_m = 1.0 - m
    x0 = img_ref[0, 0]                    # (tr, 128) per-channel planes
    x1 = img_ref[0, 1]
    x2 = img_ref[0, 2]
    xs = (x0, x1, x2)

    # 1x1 conv as 12 VPU scalar-broadcast FMAs on full (tr,128) vreg slabs;
    # sigmoid uses the EUP slot, blend stays on VALU -> all compute hides
    # behind DMA on this memory-bound kernel.  Stores are lane/sublane dense.
    for c in range(3):
        z = (x0 * w_ref[0, c] + x1 * w_ref[1, c] + x2 * w_ref[2, c]
             + m * w_ref[3, c] + b_ref[c])
        pred = jax.nn.sigmoid(z)
        out_ref[0, c] = m * pred + one_minus_m * xs[c]


def inpaint_pallas(image_nchw, mask_nchw, weight, bias, *, tile_rows=1024):
    """image_nchw: (B,3,H,W) f32, mask_nchw: (B,1,H,W) f32 -> (B,3,H,W) f32."""
    B, C, H, W = image_nchw.shape
    assert C == 3 and mask_nchw.shape == (B, 1, H, W)
    S = H * W

    # TODO(synk): optionally accept/emit bf16 I/O (halves HBM bytes); kept f32
    # here to match the reference module's dtype exactly.
    image = image_nchw.astype(jnp.float32)
    mask = mask_nchw.astype(jnp.float32)
    weight = weight.astype(jnp.float32)            # (4, 3)
    bias = bias.astype(jnp.float32)                # (3,)

    # Flatten spatial and pad only to the next 1024-pixel (8x128) multiple so
    # the (rows, 128) view has rows % 8 == 0.  No padding for 512x512 etc.
    Sp = _round_up(S, 8 * 128)
    img = image.reshape(B, C, S)
    msk = mask.reshape(B, 1, S)
    if Sp != S:
        img = jnp.pad(img, ((0, 0), (0, 0), (0, Sp - S)))
        msk = jnp.pad(msk, ((0, 0), (0, 0), (0, Sp - S)))

    rows = Sp // 128
    tr = _pick_tile_rows(rows, tile_rows)          # exact divisor, multiple of 8
    grid = (B, rows // tr)

    img = img.reshape(B, C, rows, 128)
    msk = msk.reshape(B, 1, rows, 128)

    out = pl.pallas_call(
        _inpaint_kernel,
        out_shape=jax.ShapeDtypeStruct((B, C, rows, 128), jnp.float32),
        grid=grid,
        in_specs=[
            pl.BlockSpec(memory_space=pltpu.MemorySpace.SMEM),      # weight (4,3)
            pl.BlockSpec(memory_space=pltpu.MemorySpace.SMEM),      # bias   (3,)
            pl.BlockSpec((1, C, tr, 128), lambda b, s: (b, 0, s, 0)),  # image
            pl.BlockSpec((1, 1, tr, 128), lambda b, s: (b, 0, s, 0)),  # mask
        ],
        out_specs=pl.BlockSpec((1, C, tr, 128), lambda b, s: (b, 0, s, 0)),
        compiler_params=pltpu.CompilerParams(
            dimension_semantics=("parallel", "parallel"),
        ),
    )(weight, bias, img, msk)

    out = out.reshape(B, C, Sp)
    if Sp != S:
        out = out[:, :, :S]
    return out.reshape(B, C, H, W)


class JITWrapperPallas:
    """Mirrors JITWrapper.forward(image, mask) -> out['inpainted']."""

    def __init__(self, weight, bias):
        self.weight = weight
        self.bias = bias

    def __call__(self, image, mask):
        batch = {"image": image, "mask": mask}
        inpainted = inpaint_pallas(batch["image"], batch["mask"],
                                   self.weight, self.bias)
        out = {"inpainted": inpainted}
        return out["inpainted"]


def _reference(image, mask, weight, bias):
    x = jnp.concatenate([image, mask], axis=1)                 # (B,4,H,W)
    pred = jnp.einsum("bkhw,kc->bchw", x, weight) + bias[None, :, None, None]
    pred = jax.nn.sigmoid(pred)
    return mask * pred + (1.0 - mask) * image


if __name__ == "__main__":
    key = jax.random.PRNGKey(0)
    k_img, k_msk, k_w, k_b, k_img2, k_msk2 = jax.random.split(key, 6)

    # Deterministic synthetic parameters for the stand-in 1x1 conv.
    weight = 0.1 * jax.random.normal(k_w, (4, 3), dtype=jnp.float32)
    bias = 0.1 * jax.random.normal(k_b, (3,), dtype=jnp.float32)
    model = JITWrapperPallas(weight, bias)

    # Case 1: small shape consistent with the module (original: 1x3x512x512).
    # tile_rows=64 -> rows=128 splits into 2 spatial tiles per batch element,
    # exercising the multi-step grid on both TensorCores.
    B, H, W = 2, 128, 128
    image = jax.random.uniform(k_img, (B, 3, H, W), dtype=jnp.float32)
    mask = jax.random.uniform(k_msk, (B, 1, H, W), dtype=jnp.float32)
    out = inpaint_pallas(image, mask, weight, bias, tile_rows=64)
    jax.block_until_ready(out)
    ref = _reference(image, mask, weight, bias)
    assert out.shape == (B, 3, H, W)
    assert jnp.allclose(out, ref, atol=1e-5, rtol=1e-5)

    # Case 2: spatial size not a multiple of 1024 (exercises the minimal pad
    # path and the tile_rows divisor logic) via the wrapper-class entry point.
    B2, H2, W2 = 1, 100, 100
    image2 = jax.random.uniform(k_img2, (B2, 3, H2, W2), dtype=jnp.float32)
    mask2 = jax.random.uniform(k_msk2, (B2, 1, H2, W2), dtype=jnp.float32)
    out2 = model(image2, mask2)
    jax.block_until_ready(out2)
    ref2 = _reference(image2, mask2, weight, bias)
    assert out2.shape == (B2, 3, H2, W2)
    assert jnp.allclose(out2, ref2, atol=1e-5, rtol=1e-5)

    print("KERNEL_OK")
</pallas_src>

<mosaic_0001>
module attributes {stable_mosaic.version = 11 : i64} {
  func.func @_inpaint_kernel(%arg0: i32, %arg1: i32, %arg2: memref<4x3xf32, #tpu.memory_space<smem>>, %arg3: memref<3xf32, #tpu.memory_space<smem>>, %arg4: memref<1x3x64x128xf32, #tpu.memory_space<vmem>>, %arg5: memref<1x1x64x128xf32, #tpu.memory_space<vmem>>, %arg6: memref<1x3x64x128xf32, #tpu.memory_space<vmem>>) attributes {dimension_semantics = [#tpu.dimension_semantics<parallel>, #tpu.dimension_semantics<parallel>], iteration_bounds = array<i64: 2, 2>, scalar_prefetch = 0 : i64, scratch_operands = 0 : i64, tpu.core_type = #tpu.core_type<tc>, window_params = [{transform_indices = @transform_0, window_bounds = array<i64: 4, 3>}, {transform_indices = @transform_1, window_bounds = array<i64: 3>}, {transform_indices = @transform_2, window_bounds = array<i64: 1, 3, 64, 128>}, {transform_indices = @transform_3, window_bounds = array<i64: 1, 1, 64, 128>}, {transform_indices = @transform_4, window_bounds = array<i64: 1, 3, 64, 128>}]} {
    %c0 = arith.constant 0 : index
    %c0_0 = arith.constant 0 : index
    %c0_1 = arith.constant 0 : index
    %c0_2 = arith.constant 0 : index
    %0 = vector.load %arg5[%c0, %c0_0, %c0_1, %c0_2] : memref<1x1x64x128xf32, #tpu.memory_space<vmem>>, vector<1x1x64x128xf32>
    %1 = vector.shape_cast %0 : vector<1x1x64x128xf32> to vector<64x128xf32>
    %cst = arith.constant 1.000000e+00 : f32
    %2 = vector.broadcast %cst : f32 to vector<64x128xf32>
    %3 = arith.subf %2, %1 : vector<64x128xf32>
    %c0_3 = arith.constant 0 : index
    %c0_4 = arith.constant 0 : index
    %c0_5 = arith.constant 0 : index
    %c0_6 = arith.constant 0 : index
    %4 = vector.load %arg4[%c0_3, %c0_4, %c0_5, %c0_6] : memref<1x3x64x128xf32, #tpu.memory_space<vmem>>, vector<1x1x64x128xf32>
    %5 = vector.shape_cast %4 : vector<1x1x64x128xf32> to vector<64x128xf32>
    %c0_7 = arith.constant 0 : index
    %c1 = arith.constant 1 : index
    %c0_8 = arith.constant 0 : index
    %c0_9 = arith.constant 0 : index
    %6 = vector.load %arg4[%c0_7, %c1, %c0_8, %c0_9] : memref<1x3x64x128xf32, #tpu.memory_space<vmem>>, vector<1x1x64x128xf32>
    %7 = vector.shape_cast %6 : vector<1x1x64x128xf32> to vector<64x128xf32>
    %c0_10 = arith.constant 0 : index
    %c2 = arith.constant 2 : index
    %c0_11 = arith.constant 0 : index
    %c0_12 = arith.constant 0 : index
    %8 = vector.load %arg4[%c0_10, %c2, %c0_11, %c0_12] : memref<1x3x64x128xf32, #tpu.memory_space<vmem>>, vector<1x1x64x128xf32>
    %9 = vector.shape_cast %8 : vector<1x1x64x128xf32> to vector<64x128xf32>
    %c0_13 = arith.constant 0 : index
    %c0_14 = arith.constant 0 : index
    %10 = memref.load %arg2[%c0_13, %c0_14] : memref<4x3xf32, #tpu.memory_space<smem>>
    %11 = vector.broadcast %10 : f32 to vector<64x128xf32>
    %12 = arith.mulf %5, %11 : vector<64x128xf32>
    %c1_15 = arith.constant 1 : index
    %c0_16 = arith.constant 0 : index
    %13 = memref.load %arg2[%c1_15, %c0_16] : memref<4x3xf32, #tpu.memory_space<smem>>
    %14 = vector.broadcast %13 : f32 to vector<64x128xf32>
    %15 = arith.mulf %7, %14 : vector<64x128xf32>
    %16 = arith.addf %12, %15 : vector<64x128xf32>
    %c2_17 = arith.constant 2 : index
    %c0_18 = arith.constant 0 : index
    %17 = memref.load %arg2[%c2_17, %c0_18] : memref<4x3xf32, #tpu.memory_space<smem>>
    %18 = vector.broadcast %17 : f32 to vector<64x128xf32>
    %19 = arith.mulf %9, %18 : vector<64x128xf32>
    %20 = arith.addf %16, %19 : vector<64x128xf32>
    %c3 = arith.constant 3 : index
    %c0_19 = arith.constant 0 : index
    %21 = memref.load %arg2[%c3, %c0_19] : memref<4x3xf32, #tpu.memory_space<smem>>
    %22 = vector.broadcast %21 : f32 to vector<64x128xf32>
    %23 = arith.mulf %1, %22 : vector<64x128xf32>
    %24 = arith.addf %20, %23 : vector<64x128xf32>
    %c0_20 = arith.constant 0 : index
    %25 = memref.load %arg3[%c0_20] : memref<3xf32, #tpu.memory_space<smem>>
    %26 = vector.broadcast %25 : f32 to vector<64x128xf32>
    %27 = arith.addf %24, %26 : vector<64x128xf32>
    %28 = arith.negf %27 : vector<64x128xf32>
    %29 = math.exp %28 : vector<64x128xf32>
    %cst_21 = arith.constant 1.000000e+00 : f32
    %30 = vector.broadcast %cst_21 : f32 to vector<64x128xf32>
    %31 = arith.addf %30, %29 : vector<64x128xf32>
    %32 = arith.divf %30, %31 : vector<64x128xf32>
    %33 = arith.mulf %1, %32 : vector<64x128xf32>
    %34 = arith.mulf %3, %5 : vector<64x128xf32>
    %35 = arith.addf %33, %34 : vector<64x128xf32>
    %c0_22 = arith.constant 0 : index
    %c0_23 = arith.constant 0 : index
    %c0_24 = arith.constant 0 : index
    %c0_25 = arith.constant 0 : index
    %36 = vector.load %arg6[%c0_22, %c0_23, %c0_24, %c0_25] : memref<1x3x64x128xf32, #tpu.memory_space<vmem>>, vector<1x1x64x128xf32>
    %37 = vector.shape_cast %36 : vector<1x1x64x128xf32> to vector<64x128xf32>
    %38 = vector.shape_cast %35 : vector<64x128xf32> to vector<1x1x64x128xf32>
    tpu.vector_store %arg6[%c0_22, %c0_23, %c0_24, %c0_25], %38 {strides = array<i32>} : memref<1x3x64x128xf32, #tpu.memory_space<vmem>>, vector<1x1x64x128xf32>,
    %c0_26 = arith.constant 0 : index
    %c1_27 = arith.constant 1 : index
    %39 = memref.load %arg2[%c0_26, %c1_27] : memref<4x3xf32, #tpu.memory_space<smem>>
    %40 = vector.broadcast %39 : f32 to vector<64x128xf32>
    %41 = arith.mulf %5, %40 : vector<64x128xf32>
    %c1_28 = arith.constant 1 : index
    %c1_29 = arith.constant 1 : index
    %42 = memref.load %arg2[%c1_28, %c1_29] : memref<4x3xf32, #tpu.memory_space<smem>>
    %43 = vector.broadcast %42 : f32 to vector<64x128xf32>
    %44 = arith.mulf %7, %43 : vector<64x128xf32>
    %45 = arith.addf %41, %44 : vector<64x128xf32>
    %c2_30 = arith.constant 2 : index
    %c1_31 = arith.constant 1 : index
    %46 = memref.load %arg2[%c2_30, %c1_31] : memref<4x3xf32, #tpu.memory_space<smem>>
    %47 = vector.broadcast %46 : f32 to vector<64x128xf32>
    %48 = arith.mulf %9, %47 : vector<64x128xf32>
    %49 = arith.addf %45, %48 : vector<64x128xf32>
    %c3_32 = arith.constant 3 : index
    %c1_33 = arith.constant 1 : index
    %50 = memref.load %arg2[%c3_32, %c1_33] : memref<4x3xf32, #tpu.memory_space<smem>>
    %51 = vector.broadcast %50 : f32 to vector<64x128xf32>
    %52 = arith.mulf %1, %51 : vector<64x128xf32>
    %53 = arith.addf %49, %52 : vector<64x128xf32>
    %c1_34 = arith.constant 1 : index
    %54 = memref.load %arg3[%c1_34] : memref<3xf32, #tpu.memory_space<smem>>
    %55 = vector.broadcast %54 : f32 to vector<64x128xf32>
    %56 = arith.addf %53, %55 : vector<64x128xf32>
    %57 = arith.negf %56 : vector<64x128xf32>
    %58 = math.exp %57 : vector<64x128xf32>
    %cst_35 = arith.constant 1.000000e+00 : f32
    %59 = vector.broadcast %cst_35 : f32 to vector<64x128xf32>
    %60 = arith.addf %59, %58 : vector<64x128xf32>
    %61 = arith.divf %59, %60 : vector<64x128xf32>
    %62 = arith.mulf %1, %61 : vector<64x128xf32>
    %63 = arith.mulf %3, %7 : vector<64x128xf32>
    %64 = arith.addf %62, %63 : vector<64x128xf32>
    %c0_36 = arith.constant 0 : index
    %c1_37 = arith.constant 1 : index
    %c0_38 = arith.constant 0 : index
    %c0_39 = arith.constant 0 : index
    %65 = vector.load %arg6[%c0_36, %c1_37, %c0_38, %c0_39] : memref<1x3x64x128xf32, #tpu.memory_space<vmem>>, vector<1x1x64x128xf32>
    %66 = vector.shape_cast %65 : vector<1x1x64x128xf32> to vector<64x128xf32>
    %67 = vector.shape_cast %64 : vector<64x128xf32> to vector<1x1x64x128xf32>
    tpu.vector_store %arg6[%c0_36, %c1_37, %c0_38, %c0_39], %67 {strides = array<i32>} : memref<1x3x64x128xf32, #tpu.memory_space<vmem>>, vector<1x1x64x128xf32>,
    %c0_40 = arith.constant 0 : index
    %c2_41 = arith.constant 2 : index
    %68 = memref.load %arg2[%c0_40, %c2_41] : memref<4x3xf32, #tpu.memory_space<smem>>
    %69 = vector.broadcast %68 : f32 to vector<64x128xf32>
    %70 = arith.mulf %5, %69 : vector<64x128xf32>
    %c1_42 = arith.constant 1 : index
    %c2_43 = arith.constant 2 : index
    %71 = memref.load %arg2[%c1_42, %c2_43] : memref<4x3xf32, #tpu.memory_space<smem>>
    %72 = vector.broadcast %71 : f32 to vector<64x128xf32>
    %73 = arith.mulf %7, %72 : vector<64x128xf32>
    %74 = arith.addf %70, %73 : vector<64x128xf32>
    %c2_44 = arith.constant 2 : index
    %c2_45 = arith.constant 2 : index
    %75 = memref.load %arg2[%c2_44, %c2_45] : memref<4x3xf32, #tpu.memory_space<smem>>
    %76 = vector.broadcast %75 : f32 to vector<64x128xf32>
    %77 = arith.mulf %9, %76 : vector<64x128xf32>
    %78 = arith.addf %74, %77 : vector<64x128xf32>
    %c3_46 = arith.constant 3 : index
    %c2_47 = arith.constant 2 : index
    %79 = memref.load %arg2[%c3_46, %c2_47] : memref<4x3xf32, #tpu.memory_space<smem>>
    %80 = vector.broadcast %79 : f32 to vector<64x128xf32>
    %81 = arith.mulf %1, %80 : vector<64x128xf32>
    %82 = arith.addf %78, %81 : vector<64x128xf32>
    %c2_48 = arith.constant 2 : index
    %83 = memref.load %arg3[%c2_48] : memref<3xf32, #tpu.memory_space<smem>>
    %84 = vector.broadcast %83 : f32 to vector<64x128xf32>
    %85 = arith.addf %82, %84 : vector<64x128xf32>
    %86 = arith.negf %85 : vector<64x128xf32>
    %87 = math.exp %86 : vector<64x128xf32>
    %cst_49 = arith.constant 1.000000e+00 : f32
    %88 = vector.broadcast %cst_49 : f32 to vector<64x128xf32>
    %89 = arith.addf %88, %87 : vector<64x128xf32>
    %90 = arith.divf %88, %89 : vector<64x128xf32>
    %91 = arith.mulf %1, %90 : vector<64x128xf32>
    %92 = arith.mulf %3, %9 : vector<64x128xf32>
    %93 = arith.addf %91, %92 : vector<64x128xf32>
    %c0_50 = arith.constant 0 : index
    %c2_51 = arith.constant 2 : index
    %c0_52 = arith.constant 0 : index
    %c0_53 = arith.constant 0 : index
    %94 = vector.load %arg6[%c0_50, %c2_51, %c0_52, %c0_53] : memref<1x3x64x128xf32, #tpu.memory_space<vmem>>, vector<1x1x64x128xf32>
    %95 = vector.shape_cast %94 : vector<1x1x64x128xf32> to vector<64x128xf32>
    %96 = vector.shape_cast %93 : vector<64x128xf32> to vector<1x1x64x128xf32>
    tpu.vector_store %arg6[%c0_50, %c2_51, %c0_52, %c0_53], %96 {strides = array<i32>} : memref<1x3x64x128xf32, #tpu.memory_space<vmem>>, vector<1x1x64x128xf32>,
    return
  }
  func.func @transform_0(%arg0: i32, %arg1: i32) -> (i32, i32) {
    %c0_i32 = arith.constant 0 : i32
    %c0_i32_0 = arith.constant 0 : i32
    %c0_i32_1 = arith.constant 0 : i32
    return %c0_i32, %c0_i32_0 : i32, i32
  }
  func.func @transform_1(%arg0: i32, %arg1: i32) -> i32 {
    %c0_i32 = arith.constant 0 : i32
    %c0_i32_0 = arith.constant 0 : i32
    return %c0_i32 : i32
  }
  func.func @transform_2(%arg0: i32, %arg1: i32) -> (i32, i32, i32, i32) {
    %c0_i32 = arith.constant 0 : i32
    %c0_i32_0 = arith.constant 0 : i32
    %c0_i32_1 = arith.constant 0 : i32
    return %arg0, %c0_i32, %arg1, %c0_i32_0 : i32, i32, i32, i32
  }
  func.func @transform_3(%arg0: i32, %arg1: i32) -> (i32, i32, i32, i32) {
    %c0_i32 = arith.constant 0 : i32
    %c0_i32_0 = arith.constant 0 : i32
    %c0_i32_1 = arith.constant 0 : i32
    return %arg0, %c0_i32, %arg1, %c0_i32_0 : i32, i32, i32, i32
  }
  func.func @transform_4(%arg0: i32, %arg1: i32) -> (i32, i32, i32, i32) {
    %c0_i32 = arith.constant 0 : i32
    %c0_i32_0 = arith.constant 0 : i32
    %c0_i32_1 = arith.constant 0 : i32
    return %arg0, %c0_i32, %arg1, %c0_i32_0 : i32, i32, i32, i32
  }
}

</mosaic_0001>

<llo_original>
// kernel: tpu_custom_call.1
$region0: #{tpu_custom_call.1}
  #allocation0 [shape = 'u32[]', space=smem, size = 0x4, offset = 0x4, fixed_abs, tag = 'smem constant byte address 0x4 - core index']
  #allocation1 [shape = 'u32[144,128]{1,0:T(1,128)}', space=vmem, size = 0x12000, scoped, tag = 'internal scratch']
  #allocation12 [shape = 's32[]', space=sflag, size = 0x4, offset = 0, fixed_abs, tag = 'sflag constant byte address 0x0 - dummy sync flag']
  #allocation14 [shape = 's32[]', space=sflag, size = 0x4, offset = 0, fixed_abs, tag = 'sflag constant byte address 0x0 - dummy sync flag']
  %s0 = inlined_call_operand.hbm [shape: f32[4,3], index: 0, kind: input, shape index: {}]
  %s1 = inlined_call_operand.vmem [shape: f32[3], index: 1, kind: input, shape index: {}]
  %s2 = inlined_call_operand.hbm [shape: f32[2,3,128,128], index: 2, kind: input, shape index: {}]
  %s3 = inlined_call_operand.hbm [shape: f32[2,1,128,128], index: 3, kind: input, shape index: {}]
  %s4 = inlined_call_operand.hbm [shape: f32[2,3,128,128], index: 4, kind: output, shape index: {}]
  %s5 = sld [smem:[#allocation0]]
  $region65: #{tpu_custom_call.1} parent=0
    _
  %s7 = ssub.s32 1, %s5
  %s8 = scalar_select 0, %s7, %s5
  $region1: #{tpu_custom_call.1} parent=0
    #allocation2 [shape = 'u8[2048]{0}', space=smem, size = 0x800, scoped, tag = 'input window, operand 0, single buffered']
    #allocation3 [shape = 's32[2]{0}', space=sflag, size = 0x8, scoped, tag = 'scoped memory for tpu_custom_call.1']
    #allocation4 [shape = 's32[2]{0}', space=sflag, size = 0x8, scoped, tag = 'scoped memory for tpu_custom_call.1']
    #allocation5 [shape = 's32[2]{0}', space=sflag, size = 0x8, scoped, tag = 'scoped memory for tpu_custom_call.1']
    #allocation6 [shape = 's32[2]{0}', space=sflag, size = 0x8, scoped, tag = 'scoped memory for tpu_custom_call.1']
    #allocation7 [shape = 'u8[512]{0}', space=smem, size = 0x200, scoped, tag = 'input window, operand 1, single buffered']
    #allocation8 [shape = 'u8[196608]{0}', space=vmem, size = 0x30000, scoped, tag = 'input window, operand 2']
    #allocation9 [shape = 'u8[65536]{0}', space=vmem, size = 0x10000, scoped, tag = 'input window, operand 3']
    #allocation10 [shape = 's32[2]{0}', space=sflag, size = 0x8, scoped, tag = 'scoped memory for tpu_custom_call.1']
    #allocation11 [shape = 'u8[196608]{0}', space=vmem, size = 0x30000, scoped, tag = 'output window, operand 0']
    %9 = vsyncpa [#allocation5], 0
    %10 = vsyncpa [#allocation6], 0
    %11 = vsyncpa [#allocation3], 0
    %s12 = scalar_lea.sflag [#allocation3], 1
    %13 = vsyncpa %s12, 0
    %14 = vsyncpa [#allocation10], 0
    %s15 = scalar_lea.sflag [#allocation10], 1
    %16 = vsyncpa %s15, 0
    %17 = vsyncpa [#allocation4], 0
    %s18 = scalar_lea.sflag [#allocation4], 1
    %19 = vsyncpa %s18, 0
    loop: start=0, step=1, limit=6
    $region2: #{tpu_custom_call.1} parent=1 // loop_pre_header
      _
    $region3: #{tpu_custom_call.1} parent=1 // loop_header
      %s21 = sphi 0, %s25
      %p22 = scmp.ge.s32.totalorder %s21, 6
      %s28 = sphi 0, %s40
      %s29 = sphi 0, %s36
      %s30 = sphi 0, %s28
      %s31 = sphi 0, %s29
      %s32 = sphi 0, %s30
      %s33 = sphi 0, %s31
      %s41 = sphi 0, %s41
      %s43 = sphi 0, %s41
      %s44 = sphi 0, %s43
      %s58 = sphi 0, %s44
      %s62 = sphi 0, %s62
      %s64 = sphi 0, %s62
      %s65 = sphi 0, %s64
      %s79 = sphi 0, %s65
      %s87 = sphi 0, %s89
      %s90 = sphi 0, %s87
      %s91 = sphi 0, %s90
      %s107 = sphi 0, %s91
      %s115 = sphi 0, %s117
      %s118 = sphi 0, %s115
      %s119 = sphi 0, %s118
      %s135 = sphi 0, %s119
      %s143 = sphi 0, %s145
      %s146 = sphi 0, %s143
      %s147 = sphi 0, %s146
      %s163 = sphi 0, %s147
    $region4: #{tpu_custom_call.1} parent=1 // loop_header_branch
      %24 = sbr.rel (%p22) target = $region8
    $region5: #{tpu_custom_call.1} parent=1 // loop_body
      %s26 = ssub.s32 %s21, 1
      %s27 = ssub.s32 %s21, 2
      %s34 = sadd.s32 1, %s29
      %p35 = scmp.ge.s32.totalorder %s34, 2
      %s36 = scalar_select %p35, 0, %s34
      %s37 = sadd.s32 1, %s28
      %s38 = scalar_select %p35, %s37, %s28
      %p39 = scmp.ge.s32.totalorder %s38, 2
      %s40 = scalar_select %p39, 0, %s38
      %s42 = sadd.s32 %s41, 1
      %p45 = scmp.eq.s32.totalorder %s21, 3
      %p46 = scmp.ne.s32.totalorder %s41, %s43
      %p47 = scmp.eq.s32.totalorder %s21, 0
      %p48 = por %p46, %p47
      %p49 = scmp.ne.s32.totalorder %s41, %s43
      %p50 = scmp.eq.s32.totalorder %s26, 3
      %p51 = por %p49, %p50
      %p52 = scmp.ne.s32.totalorder %s43, %s44
      %p53 = scmp.eq.s32.totalorder %s26, 0
      %p54 = por %p52, %p53
      %p55 = scmp.ne.s32.totalorder %s43, %s44
      %p56 = scmp.eq.s32.totalorder %s27, 3
      %p57 = por %p55, %p56
      %p59 = scmp.ne.s32.totalorder %s44, %s58
      %p60 = scmp.eq.s32.totalorder %s27, 0
      %p61 = por %p59, %p60
      %s63 = sadd.s32 %s62, 1
      %p66 = scmp.eq.s32.totalorder %s21, 3
      %p67 = scmp.ne.s32.totalorder %s62, %s64
      %p68 = scmp.eq.s32.totalorder %s21, 0
      %p69 = por %p67, %p68
      %p70 = scmp.ne.s32.totalorder %s62, %s64
      %p71 = scmp.eq.s32.totalorder %s26, 3
      %p72 = por %p70, %p71
      %p73 = scmp.ne.s32.totalorder %s64, %s65
      %p74 = scmp.eq.s32.totalorder %s26, 0
      %p75 = por %p73, %p74
      %p76 = scmp.ne.s32.totalorder %s64, %s65
      %p77 = scmp.eq.s32.totalorder %s27, 3
      %p78 = por %p76, %p77
      %p80 = scmp.ne.s32.totalorder %s65, %s79
      %p81 = scmp.eq.s32.totalorder %s27, 0
      %p82 = por %p80, %p81
      %s83 = ssub.s32 %s28, %s40
      %s84 = ssub.s32 %s29, %s36
      %s85 = sor.u32 %s83, %s84
      %p86 = scmp.eq.s32.totalorder %s85, 0
      %s88 = sadd.s32 %s87, 1
      %s89 = scalar_select %p86, %s87, %s88
      %p92 = pneg %p86
      %p93 = scmp.eq.s32.totalorder %s21, 3
      %p94 = por %p92, %p93
      %p95 = scmp.ne.s32.totalorder %s87, %s90
      %p96 = scmp.eq.s32.totalorder %s21, 0
      %p97 = por %p95, %p96
      %p98 = scmp.ne.s32.totalorder %s87, %s90
      %p99 = scmp.eq.s32.totalorder %s26, 3
      %p100 = por %p98, %p99
      %p101 = scmp.ne.s32.totalorder %s90, %s91
      %p102 = scmp.eq.s32.totalorder %s26, 0
      %p103 = por %p101, %p102
      %p104 = scmp.ne.s32.totalorder %s90, %s91
      %p105 = scmp.eq.s32.totalorder %s27, 3
      %p106 = por %p104, %p105
      %p108 = scmp.ne.s32.totalorder %s91, %s107
      %p109 = scmp.eq.s32.totalorder %s27, 0
      %p110 = por %p108, %p109
      %s111 = ssub.s32 %s28, %s40
      %s112 = ssub.s32 %s29, %s36
      %s113 = sor.u32 %s111, %s112
      %p114 = scmp.eq.s32.totalorder %s113, 0
      %s116 = sadd.s32 %s115, 1
      %s117 = scalar_select %p114, %s115, %s116
      %p120 = pneg %p114
      %p121 = scmp.eq.s32.totalorder %s21, 3
      %p122 = por %p120, %p121
      %p123 = scmp.ne.s32.totalorder %s115, %s118
      %p124 = scmp.eq.s32.totalorder %s21, 0
      %p125 = por %p123, %p124
      %p126 = scmp.ne.s32.totalorder %s115, %s118
      %p127 = scmp.eq.s32.totalorder %s26, 3
      %p128 = por %p126, %p127
      %p129 = scmp.ne.s32.totalorder %s118, %s119
      %p130 = scmp.eq.s32.totalorder %s26, 0
      %p131 = por %p129, %p130
      %p132 = scmp.ne.s32.totalorder %s118, %s119
      %p133 = scmp.eq.s32.totalorder %s27, 3
      %p134 = por %p132, %p133
      %p136 = scmp.ne.s32.totalorder %s119, %s135
      %p137 = scmp.eq.s32.totalorder %s27, 0
      %p138 = por %p136, %p137
      %s139 = ssub.s32 %s28, %s40
      %s140 = ssub.s32 %s29, %s36
      %s141 = sor.u32 %s139, %s140
      %p142 = scmp.eq.s32.totalorder %s141, 0
      %s144 = sadd.s32 %s143, 1
      %s145 = scalar_select %p142, %s143, %s144
      %p148 = pneg %p142
      %p149 = scmp.eq.s32.totalorder %s21, 3
      %p150 = por %p148, %p149
      %p151 = scmp.ne.s32.totalorder %s143, %s146
      %p152 = scmp.eq.s32.totalorder %s21, 0
      %p153 = por %p151, %p152
      %p154 = scmp.ne.s32.totalorder %s143, %s146
      %p155 = scmp.eq.s32.totalorder %s26, 3
      %p156 = por %p154, %p155
      %p157 = scmp.ne.s32.totalorder %s146, %s147
      %p158 = scmp.eq.s32.totalorder %s26, 0
      %p159 = por %p157, %p158
      %p160 = scmp.ne.s32.totalorder %s146, %s147
      %p161 = scmp.eq.s32.totalorder %s27, 3
      %p162 = por %p160, %p161
      %p164 = scmp.ne.s32.totalorder %s147, %s163
      %p165 = scmp.eq.s32.totalorder %s27, 0
      %p166 = por %p164, %p165
      %p167 = scmp.le.s32.totalorder 1, %s21
      %p168 = scmp.lt.s32.totalorder %s21, 5
      %p169 = pnand %p167, %p168
      %p170 = pneg %p169
      // Predicated region
      $region9: #{tpu_custom_call.1} parent=5 // pred_check
        _
      $region10: #{tpu_custom_call.1} parent=5 // pred_check_branch
        %172 = sbr.rel (%p169) target = $region12
      $region11: #{tpu_custom_call.1} parent=5 // pred_region
        %s173 = ssub.s32 %s21, 1
        // Predicated region
        $region13: #{tpu_custom_call.1} parent=11 // pred_check
          %p174 = pneg %p54
        $region14: #{tpu_custom_call.1} parent=11 // pred_check_branch
          %176 = sbr.rel (%p174) target = $region16
        $region15: #{tpu_custom_call.1} parent=11 // pred_region
          %s178 = ssub.s32 64, 64
          %179 = vsyncadd [#allocation5], %s178
          %182 = dma.hbm_to_smem %s0, 64, [#allocation2], [#allocation5]
        $region16: #{tpu_custom_call.1} parent=11 // pred_fallthru
          _
        // Predicated region
        $region17: #{tpu_custom_call.1} parent=11 // pred_check
          %p183 = pneg %p75
        $region18: #{tpu_custom_call.1} parent=11 // pred_check_branch
          %185 = sbr.rel (%p183) target = $region20
        $region19: #{tpu_custom_call.1} parent=11 // pred_region
          %s187 = ssub.s32 16, 16
          %188 = vsyncadd [#allocation6], %s187
          %s190 = sshll.u32 %s1, 4
          %s191 = int_to_ptr.vmem [resolvable:$true] %s190
          %193 = dma.vmem_to_smem %s191, 16, [#allocation7], [#allocation6]
        $region20: #{tpu_custom_call.1} parent=11 // pred_fallthru
          _
      $region12: #{tpu_custom_call.1} parent=5 // pred_fallthru
        _
      %p194 = scmp.lt.s32.totalorder %s21, 4
      // Predicated region
      $region21: #{tpu_custom_call.1} parent=5 // pred_check
        %p195 = pneg %p194
      $region22: #{tpu_custom_call.1} parent=5 // pred_check_branch
        %197 = sbr.rel (%p195) target = $region24
      $region23: #{tpu_custom_call.1} parent=5 // pred_region
        // Predicated region
        $region25: #{tpu_custom_call.1} parent=23 // pred_check
          %p198 = pneg %p97
        $region26: #{tpu_custom_call.1} parent=23 // pred_check_branch
          %200 = sbr.rel (%p198) target = $region28
        $region27: #{tpu_custom_call.1} parent=23 // pred_region
          #allocation13 [shape = 'u32[6]{0}', space=smem, size = 0x18, scoped, tag = 'DMA stride descriptor']
          %s201 = sand.u32 %s87, 1
          %s202 = scalar_lea.sflag [#allocation3], %s201
          %s203 = sand.u32 %s87, 1
          %s204 = smul.addr %s203, 192
          %s205 = scalar_lea.vmem [#allocation8], %s204
          %s206 = smul.u32 8, %s29
          %s208 = ssub.s32 3072, 3072
          %209 = vsyncadd %s202, %s208
          %s210 = smul.addr %s28, 48
          %s211 = sadd.s32 %s206, %s210
          %s212 = smul.addr %s211, 128
          %s213 = scalar_lea.hbm %s2, %s212
          %s215 = sshll.u32 1, 14
          %s216 = sxor.u32 4294967295, %s215
          %s218 = sld [smem:[#allocation0]]
          %s219 = sadd.s32 2, %s218
          %s221 = sshll.u32 7, 26
          %s222 = sxor.u32 4294967295, %s221
          %s223 = sand.u32 0, %s222
          %s224 = sshll.u32 %s219, 26
          %s225 = sor.u32 %s223, %s224
          %s226 = sshll.u32 %s205, 4
          %s227 = int_to_ptr.vmem [resolvable:$true] %s226
          %233 = sst [smem:[#allocation13]] 2048
          %s234 = scalar_lea.smem [#allocation13], 1
          %235 = sst [smem:[%s234]] 1024
          %s236 = scalar_lea.smem [#allocation13], 2
          %237 = sst [smem:[%s236]] 8
          %s238 = scalar_lea.smem [#allocation13], 3
          %239 = sst [smem:[%s238]] 128
          %s240 = scalar_lea.smem [#allocation13], 4
          %241 = sst [smem:[%s240]] 128
          %s242 = scalar_lea.smem [#allocation13], 5
          %243 = sst [smem:[%s242]] 8
          %245 = dma.general %s213, 3072, %s227, %s202, 131072, [#allocation13], %s225, 0
        $region28: #{tpu_custom_call.1} parent=23 // pred_fallthru
          _
        // Predicated region
        $region29: #{tpu_custom_call.1} parent=23 // pred_check
          %p246 = pneg %p125
        $region30: #{tpu_custom_call.1} parent=23 // pred_check_branch
          %248 = sbr.rel (%p246) target = $region32
        $region31: #{tpu_custom_call.1} parent=23 // pred_region
          %s249 = sand.u32 %s115, 1
          %s250 = scalar_lea.sflag [#allocation10], %s249
          %s251 = sand.u32 %s115, 1
          %s252 = smul.addr %s251, 64
          %s253 = scalar_lea.vmem [#allocation9], %s252
          %s254 = smul.u32 8, %s29
          %s256 = ssub.s32 1024, 1024
          %257 = vsyncadd %s250, %s256
          %s258 = smul.addr %s28, 16
          %s259 = sadd.s32 %s254, %s258
          %s260 = smul.addr %s259, 128
          %s261 = scalar_lea.hbm %s3, %s260
          %s262 = sshll.u32 %s253, 4
          %s263 = int_to_ptr.vmem [resolvable:$true] %s262
          %268 = dma.hbm_to_vmem [thread:$0]  %s261, 1024, %s263, %s250, 128, 128, 8
        $region32: #{tpu_custom_call.1} parent=23 // pred_fallthru
          _
      $region24: #{tpu_custom_call.1} parent=5 // pred_fallthru
        _
      %p269 = scmp.le.s32.totalorder 1, %s21
      %p270 = scmp.lt.s32.totalorder %s21, 5
      %p271 = pnand %p269, %p270
      %p272 = pneg %p271
      // Predicated region
      $region33: #{tpu_custom_call.1} parent=5 // pred_check
        _
      $region34: #{tpu_custom_call.1} parent=5 // pred_check_branch
        %274 = sbr.rel (%p271) target = $region36
      $region35: #{tpu_custom_call.1} parent=5 // pred_region
        %s275 = ssub.s32 %s21, 1
        // Predicated region
        $region37: #{tpu_custom_call.1} parent=35 // pred_check
          %p276 = pneg %p54
        $region38: #{tpu_custom_call.1} parent=35 // pred_check_branch
          %278 = sbr.rel (%p276) target = $region40
        $region39: #{tpu_custom_call.1} parent=35 // pred_region
          %279 = dma.done [#allocation5], 64
        $region40: #{tpu_custom_call.1} parent=35 // pred_fallthru
          _
        // Predicated region
        $region41: #{tpu_custom_call.1} parent=35 // pred_check
          %p280 = pneg %p75
        $region42: #{tpu_custom_call.1} parent=35 // pred_check_branch
          %282 = sbr.rel (%p280) target = $region44
        $region43: #{tpu_custom_call.1} parent=35 // pred_region
          %283 = dma.done [#allocation6], 16
        $region44: #{tpu_custom_call.1} parent=35 // pred_fallthru
          _
        %s284 = sand.u32 %s90, 1
        %s285 = scalar_lea.sflag [#allocation3], %s284
        %s286 = sand.u32 %s90, 1
        %s287 = smul.addr %s286, 192
        %s288 = scalar_lea.vmem [#allocation8], %s287
        // Predicated region
        $region45: #{tpu_custom_call.1} parent=35 // pred_check
          %p289 = pneg %p103
        $region46: #{tpu_custom_call.1} parent=35 // pred_check_branch
          %291 = sbr.rel (%p289) target = $region48
        $region47: #{tpu_custom_call.1} parent=35 // pred_region
          %292 = dma.done %s285, 3072
        $region48: #{tpu_custom_call.1} parent=35 // pred_fallthru
          _
        %s293 = sand.u32 %s118, 1
        %s294 = scalar_lea.sflag [#allocation10], %s293
        %s295 = sand.u32 %s118, 1
        %s296 = smul.addr %s295, 64
        %s297 = scalar_lea.vmem [#allocation9], %s296
        // Predicated region
        $region49: #{tpu_custom_call.1} parent=35 // pred_check
          %p298 = pneg %p131
        $region50: #{tpu_custom_call.1} parent=35 // pred_check_branch
          %300 = sbr.rel (%p298) target = $region52
        $region51: #{tpu_custom_call.1} parent=35 // pred_region
          %301 = dma.done %s294, 1024
        $region52: #{tpu_custom_call.1} parent=35 // pred_fallthru
          _
        %302 = sfence
        %p303 = pneg %p54
        %p304 = pneg %p51
        %p305 = pneg %p75
        %p306 = pneg %p72
        %s307 = sand.u32 %s90, 1
        %s308 = scalar_lea.sflag [#allocation3], %s307
        %s309 = sand.u32 %s90, 1
        %s310 = smul.addr %s309, 192
        %s311 = scalar_lea.vmem [#allocation8], %s310
        %p312 = pneg %p103
        %p313 = pneg %p100
        %s314 = sand.u32 %s118, 1
        %s315 = scalar_lea.sflag [#allocation10], %s314
        %s316 = sand.u32 %s118, 1
        %s317 = smul.addr %s316, 64
        %s318 = scalar_lea.vmem [#allocation9], %s317
        %p319 = pneg %p131
        %p320 = pneg %p128
        %p321 = pneg %p159
        %p322 = pneg %p156
        %s323 = sand.u32 %s146, 1
        %s324 = scalar_lea.sflag [#allocation4], %s323
        %s325 = sand.u32 %s146, 1
        %s326 = smul.addr %s325, 192
        %s327 = scalar_lea.vmem [#allocation11], %s326
        %s328 = smul.u32 8, %s31
        %s329 = smul.u32 8, %s31
        %s330 = smul.u32 8, %s31
        %v331 = vld [vmem:[%s297] sm:$0xff]
        %v332 = vld [vmem:[%s297 + $0x8] sm:$0xff]
        %v333 = vld [vmem:[%s297 + $0x10] sm:$0xff]
        %v334 = vld [vmem:[%s297 + $0x18] sm:$0xff]
        %v335 = vld [vmem:[%s297 + $0x20] sm:$0xff]
        %v336 = vld [vmem:[%s297 + $0x28] sm:$0xff]
        %v337 = vld [vmem:[%s297 + $0x30] sm:$0xff]
        %v338 = vld [vmem:[%s297 + $0x38] sm:$0xff]
        %v339 = vsub.f32 1.0, %v331
        %v340 = vsub.f32 1.0, %v332
        %v341 = vsub.f32 1.0, %v333
        %v342 = vsub.f32 1.0, %v334
        %v343 = vsub.f32 1.0, %v335
        %v344 = vsub.f32 1.0, %v336
        %v345 = vsub.f32 1.0, %v337
        %v346 = vsub.f32 1.0, %v338
        %v347 = vld [vmem:[%s288] sm:$0xff]
        %v348 = vld [vmem:[%s288 + $0x8] sm:$0xff]
        %v349 = vld [vmem:[%s288 + $0x10] sm:$0xff]
        %v350 = vld [vmem:[%s288 + $0x18] sm:$0xff]
        %v351 = vld [vmem:[%s288 + $0x20] sm:$0xff]
        %v352 = vld [vmem:[%s288 + $0x28] sm:$0xff]
        %v353 = vld [vmem:[%s288 + $0x30] sm:$0xff]
        %v354 = vld [vmem:[%s288 + $0x38] sm:$0xff]
        %s355 = scalar_lea.vmem %s288, 64 [#allocation8]
        %v356 = vld [vmem:[%s355] sm:$0xff]
        %v357 = vld [vmem:[%s355 + $0x8] sm:$0xff]
        %v358 = vld [vmem:[%s355 + $0x10] sm:$0xff]
        %v359 = vld [vmem:[%s355 + $0x18] sm:$0xff]
        %v360 = vld [vmem:[%s355 + $0x20] sm:$0xff]
        %v361 = vld [vmem:[%s355 + $0x28] sm:$0xff]
        %v362 = vld [vmem:[%s355 + $0x30] sm:$0xff]
        %v363 = vld [vmem:[%s355 + $0x38] sm:$0xff]
        %s364 = scalar_lea.vmem %s288, 128 [#allocation8]
        %v365 = vld [vmem:[%s364] sm:$0xff]
        %v366 = vld [vmem:[%s364 + $0x8] sm:$0xff]
        %v367 = vld [vmem:[%s364 + $0x10] sm:$0xff]
        %v368 = vld [vmem:[%s364 + $0x18] sm:$0xff]
        %v369 = vld [vmem:[%s364 + $0x20] sm:$0xff]
        %v370 = vld [vmem:[%s364 + $0x28] sm:$0xff]
        %v371 = vld [vmem:[%s364 + $0x30] sm:$0xff]
        %v372 = vld [vmem:[%s364 + $0x38] sm:$0xff]
        %s373 = sld [smem:[#allocation2]]
        %v374 = vstv %s373
        %v375 = vmul.f32 %v347, %v374
        %v376 = vmul.f32 %v348, %v374
        %v377 = vmul.f32 %v349, %v374
        %v378 = vmul.f32 %v350, %v374
        %v379 = vmul.f32 %v351, %v374
        %v380 = vmul.f32 %v352, %v374
        %v381 = vmul.f32 %v353, %v374
        %v382 = vmul.f32 %v354, %v374
        %s383 = sld [smem:[#allocation2 + $0x80]]
        %v384 = vstv %s383
        %v385 = vmul.f32 %v356, %v384
        %v386 = vmul.f32 %v357, %v384
        %v387 = vmul.f32 %v358, %v384
        %v388 = vmul.f32 %v359, %v384
        %v389 = vmul.f32 %v360, %v384
        %v390 = vmul.f32 %v361, %v384
        %v391 = vmul.f32 %v362, %v384
        %v392 = vmul.f32 %v363, %v384
        %v393 = vadd.f32 %v375, %v385
        %v394 = vadd.f32 %v376, %v386
        %v395 = vadd.f32 %v377, %v387
        %v396 = vadd.f32 %v378, %v388
        %v397 = vadd.f32 %v379, %v389
        %v398 = vadd.f32 %v380, %v390
        %v399 = vadd.f32 %v381, %v391
        %v400 = vadd.f32 %v382, %v392
        %s401 = sld [smem:[#allocation2 + $0x100]]
        %v402 = vstv %s401
        %v403 = vmul.f32 %v365, %v402
        %v404 = vmul.f32 %v366, %v402
        %v405 = vmul.f32 %v367, %v402
        %v406 = vmul.f32 %v368, %v402
        %v407 = vmul.f32 %v369, %v402
        %v408 = vmul.f32 %v370, %v402
        %v409 = vmul.f32 %v371, %v402
        %v410 = vmul.f32 %v372, %v402
        %v411 = vadd.f32 %v393, %v403
        %v412 = vadd.f32 %v394, %v404
        %v413 = vadd.f32 %v395, %v405
        %v414 = vadd.f32 %v396, %v406
        %v415 = vadd.f32 %v397, %v407
        %v416 = vadd.f32 %v398, %v408
        %v417 = vadd.f32 %v399, %v409
        %v418 = vadd.f32 %v400, %v410
        %s419 = sld [smem:[#allocation2 + $0x180]]
        %v420 = vstv %s419
        %v421 = vmul.f32 %v331, %v420
        %v422 = vmul.f32 %v332, %v420
        %v423 = vmul.f32 %v333, %v420
        %v424 = vmul.f32 %v334, %v420
        %v425 = vmul.f32 %v335, %v420
        %v426 = vmul.f32 %v336, %v420
        %v427 = vmul.f32 %v337, %v420
        %v428 = vmul.f32 %v338, %v420
        %v429 = vadd.f32 %v411, %v421
        %v430 = vadd.f32 %v412, %v422
        %v431 = vadd.f32 %v413, %v423
        %v432 = vadd.f32 %v414, %v424
        %v433 = vadd.f32 %v415, %v425
        %v434 = vadd.f32 %v416, %v426
        %v435 = vadd.f32 %v417, %v427
        %v436 = vadd.f32 %v418, %v428
        %s437 = sld [smem:[#allocation7]]
        %v438 = vstv %s437
        %v439 = vadd.f32 %v429, %v438
        %v440 = vadd.f32 %v430, %v438
        %v441 = vadd.f32 %v431, %v438
        %v442 = vadd.f32 %v432, %v438
        %v443 = vadd.f32 %v433, %v438
        %v444 = vadd.f32 %v434, %v438
        %v445 = vadd.f32 %v435, %v438
        %v446 = vadd.f32 %v436, %v438
        %v447 = vxor.u32 %v439, 2147483648
        %v448 = vxor.u32 %v440, 2147483648
        %v449 = vxor.u32 %v441, 2147483648
        %v450 = vxor.u32 %v442, 2147483648
        %v451 = vxor.u32 %v443, 2147483648
        %v452 = vxor.u32 %v444, 2147483648
        %v453 = vxor.u32 %v445, 2147483648
        %v454 = vxor.u32 %v446, 2147483648
        %v455 = vmul.f32 %v447, 1.442695
        %v456 = vpow.pop %v455
        %v457 = vmul.f32 %v448, 1.442695
        %v458 = vpow.pop %v457
        %v459 = vmul.f32 %v449, 1.442695
        %v460 = vpow.pop %v459
        %v461 = vmul.f32 %v450, 1.442695
        %v462 = vpow.pop %v461
        %v463 = vmul.f32 %v451, 1.442695
        %v464 = vpow.pop %v463
        %v465 = vmul.f32 %v452, 1.442695
        %v466 = vpow.pop %v465
        %v467 = vmul.f32 %v453, 1.442695
        %v468 = vpow.pop %v467
        %v469 = vmul.f32 %v454, 1.442695
        %v470 = vpow.pop %v469
        %v471 = vadd.f32 %v456, 1.0
        %v472 = vadd.f32 %v458, 1.0
        %v473 = vadd.f32 %v460, 1.0
        %v474 = vadd.f32 %v462, 1.0
        %v475 = vadd.f32 %v464, 1.0
        %v476 = vadd.f32 %v466, 1.0
        %v477 = vadd.f32 %v468, 1.0
        %v478 = vadd.f32 %v470, 1.0
        %v479 = vrcp.pop %v471
        %v480 = vmul.f32 1.0, %v479
        %v481 = vrcp.pop %v472
        %v482 = vmul.f32 1.0, %v481
        %v483 = vrcp.pop %v473
        %v484 = vmul.f32 1.0, %v483
        %v485 = vrcp.pop %v474
        %v486 = vmul.f32 1.0, %v485
        %v487 = vrcp.pop %v475
        %v488 = vmul.f32 1.0, %v487
        %v489 = vrcp.pop %v476
        %v490 = vmul.f32 1.0, %v489
        %v491 = vrcp.pop %v477
        %v492 = vmul.f32 1.0, %v491
        %v493 = vrcp.pop %v478
        %v494 = vmul.f32 1.0, %v493
        %v495 = vmul.f32 %v331, %v480
        %v496 = vmul.f32 %v332, %v482
        %v497 = vmul.f32 %v333, %v484
        %v498 = vmul.f32 %v334, %v486
        %v499 = vmul.f32 %v335, %v488
        %v500 = vmul.f32 %v336, %v490
        %v501 = vmul.f32 %v337, %v492
        %v502 = vmul.f32 %v338, %v494
        %v503 = vmul.f32 %v339, %v347
        %v504 = vmul.f32 %v340, %v348
        %v505 = vmul.f32 %v341, %v349
        %v506 = vmul.f32 %v342, %v350
        %v507 = vmul.f32 %v343, %v351
        %v508 = vmul.f32 %v344, %v352
        %v509 = vmul.f32 %v345, %v353
        %v510 = vmul.f32 %v346, %v354
        %v511 = vadd.f32 %v495, %v503
        %v512 = vadd.f32 %v496, %v504
        %v513 = vadd.f32 %v497, %v505
        %v514 = vadd.f32 %v498, %v506
        %v515 = vadd.f32 %v499, %v507
        %v516 = vadd.f32 %v500, %v508
        %v517 = vadd.f32 %v501, %v509
        %v518 = vadd.f32 %v502, %v510
        %519 = vst [vmem:[%s327] sm:$0xff] %v511
        %520 = vst [vmem:[%s327 + $0x8] sm:$0xff] %v512
        %521 = vst [vmem:[%s327 + $0x10] sm:$0xff] %v513
        %522 = vst [vmem:[%s327 + $0x18] sm:$0xff] %v514
        %523 = vst [vmem:[%s327 + $0x20] sm:$0xff] %v515
        %524 = vst [vmem:[%s327 + $0x28] sm:$0xff] %v516
        %525 = vst [vmem:[%s327 + $0x30] sm:$0xff] %v517
        %526 = vst [vmem:[%s327 + $0x38] sm:$0xff] %v518
        %s527 = sld [smem:[#allocation2 + $0x1]]
        %v528 = vstv %s527
        %v529 = vmul.f32 %v347, %v528
        %v530 = vmul.f32 %v348, %v528
        %v531 = vmul.f32 %v349, %v528
        %v532 = vmul.f32 %v350, %v528
        %v533 = vmul.f32 %v351, %v528
        %v534 = vmul.f32 %v352, %v528
        %v535 = vmul.f32 %v353, %v528
        %v536 = vmul.f32 %v354, %v528
        %s537 = sld [smem:[#allocation2 + $0x81]]
        %v538 = vstv %s537
        %v539 = vmul.f32 %v356, %v538
        %v540 = vmul.f32 %v357, %v538
        %v541 = vmul.f32 %v358, %v538
        %v542 = vmul.f32 %v359, %v538
        %v543 = vmul.f32 %v360, %v538
        %v544 = vmul.f32 %v361, %v538
        %v545 = vmul.f32 %v362, %v538
        %v546 = vmul.f32 %v363, %v538
        %v547 = vadd.f32 %v529, %v539
        %v548 = vadd.f32 %v530, %v540
        %v549 = vadd.f32 %v531, %v541
        %v550 = vadd.f32 %v532, %v542
        %v551 = vadd.f32 %v533, %v543
        %v552 = vadd.f32 %v534, %v544
        %v553 = vadd.f32 %v535, %v545
        %v554 = vadd.f32 %v536, %v546
        %s555 = sld [smem:[#allocation2 + $0x101]]
        %v556 = vstv %s555
        %v557 = vmul.f32 %v365, %v556
        %v558 = vmul.f32 %v366, %v556
        %v559 = vmul.f32 %v367, %v556
        %v560 = vmul.f32 %v368, %v556
        %v561 = vmul.f32 %v369, %v556
        %v562 = vmul.f32 %v370, %v556
        %v563 = vmul.f32 %v371, %v556
        %v564 = vmul.f32 %v372, %v556
        %v565 = vadd.f32 %v547, %v557
        %v566 = vadd.f32 %v548, %v558
        %v567 = vadd.f32 %v549, %v559
        %v568 = vadd.f32 %v550, %v560
        %v569 = vadd.f32 %v551, %v561
        %v570 = vadd.f32 %v552, %v562
        %v571 = vadd.f32 %v553, %v563
        %v572 = vadd.f32 %v554, %v564
        %s573 = sld [smem:[#allocation2 + $0x181]]
        %v574 = vstv %s573
        %v575 = vmul.f32 %v331, %v574
        %v576 = vmul.f32 %v332, %v574
        %v577 = vmul.f32 %v333, %v574
        %v578 = vmul.f32 %v334, %v574
        %v579 = vmul.f32 %v335, %v574
        %v580 = vmul.f32 %v336, %v574
        %v581 = vmul.f32 %v337, %v574
        %v582 = vmul.f32 %v338, %v574
        %v583 = vadd.f32 %v565, %v575
        %v584 = vadd.f32 %v566, %v576
        %v585 = vadd.f32 %v567, %v577
        %v586 = vadd.f32 %v568, %v578
        %v587 = vadd.f32 %v569, %v579
        %v588 = vadd.f32 %v570, %v580
        %v589 = vadd.f32 %v571, %v581
        %v590 = vadd.f32 %v572, %v582
        %s591 = sld [smem:[#allocation7 + $0x1]]
        %v592 = vstv %s591
        %v593 = vadd.f32 %v583, %v592
        %v594 = vadd.f32 %v584, %v592
        %v595 = vadd.f32 %v585, %v592
        %v596 = vadd.f32 %v586, %v592
        %v597 = vadd.f32 %v587, %v592
        %v598 = vadd.f32 %v588, %v592
        %v599 = vadd.f32 %v589, %v592
        %v600 = vadd.f32 %v590, %v592
        %v601 = vxor.u32 %v593, 2147483648
        %v602 = vxor.u32 %v594, 2147483648
        %v603 = vxor.u32 %v595, 2147483648
        %v604 = vxor.u32 %v596, 2147483648
        %v605 = vxor.u32 %v597, 2147483648
        %v606 = vxor.u32 %v598, 2147483648
        %v607 = vxor.u32 %v599, 2147483648
        %v608 = vxor.u32 %v600, 2147483648
        %v609 = vmul.f32 %v601, 1.442695
        %v610 = vpow.pop %v609
        %v611 = vmul.f32 %v602, 1.442695
        %v612 = vpow.pop %v611
        %v613 = vmul.f32 %v603, 1.442695
        %v614 = vpow.pop %v613
        %v615 = vmul.f32 %v604, 1.442695
        %v616 = vpow.pop %v615
        %v617 = vmul.f32 %v605, 1.442695
        %v618 = vpow.pop %v617
        %v619 = vmul.f32 %v606, 1.442695
        %v620 = vpow.pop %v619
        %v621 = vmul.f32 %v607, 1.442695
        %v622 = vpow.pop %v621
        %v623 = vmul.f32 %v608, 1.442695
        %v624 = vpow.pop %v623
        %v625 = vadd.f32 %v610, 1.0
        %v626 = vadd.f32 %v612, 1.0
        %v627 = vadd.f32 %v614, 1.0
        %v628 = vadd.f32 %v616, 1.0
        %v629 = vadd.f32 %v618, 1.0
        %v630 = vadd.f32 %v620, 1.0
        %v631 = vadd.f32 %v622, 1.0
        %v632 = vadd.f32 %v624, 1.0
        %v633 = vrcp.pop %v625
        %v634 = vmul.f32 1.0, %v633
        %v635 = vrcp.pop %v626
        %v636 = vmul.f32 1.0, %v635
        %v637 = vrcp.pop %v627
        %v638 = vmul.f32 1.0, %v637
        %v639 = vrcp.pop %v628
        %v640 = vmul.f32 1.0, %v639
        %v641 = vrcp.pop %v629
        %v642 = vmul.f32 1.0, %v641
        %v643 = vrcp.pop %v630
        %v644 = vmul.f32 1.0, %v643
        %v645 = vrcp.pop %v631
        %v646 = vmul.f32 1.0, %v645
        %v647 = vrcp.pop %v632
        %v648 = vmul.f32 1.0, %v647
        %v649 = vmul.f32 %v331, %v634
        %v650 = vmul.f32 %v332, %v636
        %v651 = vmul.f32 %v333, %v638
        %v652 = vmul.f32 %v334, %v640
        %v653 = vmul.f32 %v335, %v642
        %v654 = vmul.f32 %v336, %v644
        %v655 = vmul.f32 %v337, %v646
        %v656 = vmul.f32 %v338, %v648
        %v657 = vmul.f32 %v339, %v356
        %v658 = vmul.f32 %v340, %v357
        %v659 = vmul.f32 %v341, %v358
        %v660 = vmul.f32 %v342, %v359
        %v661 = vmul.f32 %v343, %v360
        %v662 = vmul.f32 %v344, %v361
        %v663 = vmul.f32 %v345, %v362
        %v664 = vmul.f32 %v346, %v363
        %v665 = vadd.f32 %v649, %v657
        %v666 = vadd.f32 %v650, %v658
        %v667 = vadd.f32 %v651, %v659
        %v668 = vadd.f32 %v652, %v660
        %v669 = vadd.f32 %v653, %v661
        %v670 = vadd.f32 %v654, %v662
        %v671 = vadd.f32 %v655, %v663
        %v672 = vadd.f32 %v656, %v664
        %s673 = scalar_lea.vmem %s327, 64 [#allocation11]
        %674 = vst [vmem:[%s673] sm:$0xff] %v665
        %675 = vst [vmem:[%s673 + $0x8] sm:$0xff] %v666
        %676 = vst [vmem:[%s673 + $0x10] sm:$0xff] %v667
        %677 = vst [vmem:[%s673 + $0x18] sm:$0xff] %v668
        %678 = vst [vmem:[%s673 + $0x20] sm:$0xff] %v669
        %679 = vst [vmem:[%s673 + $0x28] sm:$0xff] %v670
        %680 = vst [vmem:[%s673 + $0x30] sm:$0xff] %v671
        %681 = vst [vmem:[%s673 + $0x38] sm:$0xff] %v672
        %s682 = sld [smem:[#allocation2 + $0x2]]
        %v683 = vstv %s682
        %v684 = vmul.f32 %v347, %v683
        %v685 = vmul.f32 %v348, %v683
        %v686 = vmul.f32 %v349, %v683
        %v687 = vmul.f32 %v350, %v683
        %v688 = vmul.f32 %v351, %v683
        %v689 = vmul.f32 %v352, %v683
        %v690 = vmul.f32 %v353, %v683
        %v691 = vmul.f32 %v354, %v683
        %s692 = sld [smem:[#allocation2 + $0x82]]
        %v693 = vstv %s692
        %v694 = vmul.f32 %v356, %v693
        %v695 = vmul.f32 %v357, %v693
        %v696 = vmul.f32 %v358, %v693
        %v697 = vmul.f32 %v359, %v693
        %v698 = vmul.f32 %v360, %v693
        %v699 = vmul.f32 %v361, %v693
        %v700 = vmul.f32 %v362, %v693
        %v701 = vmul.f32 %v363, %v693
        %v702 = vadd.f32 %v684, %v694
        %v703 = vadd.f32 %v685, %v695
        %v704 = vadd.f32 %v686, %v696
        %v705 = vadd.f32 %v687, %v697
        %v706 = vadd.f32 %v688, %v698
        %v707 = vadd.f32 %v689, %v699
        %v708 = vadd.f32 %v690, %v700
        %v709 = vadd.f32 %v691, %v701
        %s710 = sld [smem:[#allocation2 + $0x102]]
        %v711 = vstv %s710
        %v712 = vmul.f32 %v365, %v711
        %v713 = vmul.f32 %v366, %v711
        %v714 = vmul.f32 %v367, %v711
        %v715 = vmul.f32 %v368, %v711
        %v716 = vmul.f32 %v369, %v711
        %v717 = vmul.f32 %v370, %v711
        %v718 = vmul.f32 %v371, %v711
        %v719 = vmul.f32 %v372, %v711
        %v720 = vadd.f32 %v702, %v712
        %v721 = vadd.f32 %v703, %v713
        %v722 = vadd.f32 %v704, %v714
        %v723 = vadd.f32 %v705, %v715
        %v724 = vadd.f32 %v706, %v716
        %v725 = vadd.f32 %v707, %v717
        %v726 = vadd.f32 %v708, %v718
        %v727 = vadd.f32 %v709, %v719
        %s728 = sld [smem:[#allocation2 + $0x182]]
        %v729 = vstv %s728
        %v730 = vmul.f32 %v331, %v729
        %v731 = vmul.f32 %v332, %v729
        %v732 = vmul.f32 %v333, %v729
        %v733 = vmul.f32 %v334, %v729
        %v734 = vmul.f32 %v335, %v729
        %v735 = vmul.f32 %v336, %v729
        %v736 = vmul.f32 %v337, %v729
        %v737 = vmul.f32 %v338, %v729
        %v738 = vadd.f32 %v720, %v730
        %v739 = vadd.f32 %v721, %v731
        %v740 = vadd.f32 %v722, %v732
        %v741 = vadd.f32 %v723, %v733
        %v742 = vadd.f32 %v724, %v734
        %v743 = vadd.f32 %v725, %v735
        %v744 = vadd.f32 %v726, %v736
        %v745 = vadd.f32 %v727, %v737
        %s746 = sld [smem:[#allocation7 + $0x2]]
        %v747 = vstv %s746
        %v748 = vadd.f32 %v738, %v747
        %v749 = vadd.f32 %v739, %v747
        %v750 = vadd.f32 %v740, %v747
        %v751 = vadd.f32 %v741, %v747
        %v752 = vadd.f32 %v742, %v747
        %v753 = vadd.f32 %v743, %v747
        %v754 = vadd.f32 %v744, %v747
        %v755 = vadd.f32 %v745, %v747
        %v756 = vxor.u32 %v748, 2147483648
        %v757 = vxor.u32 %v749, 2147483648
        %v758 = vxor.u32 %v750, 2147483648
        %v759 = vxor.u32 %v751, 2147483648
        %v760 = vxor.u32 %v752, 2147483648
        %v761 = vxor.u32 %v753, 2147483648
        %v762 = vxor.u32 %v754, 2147483648
        %v763 = vxor.u32 %v755, 2147483648
        %v764 = vmul.f32 %v756, 1.442695
        %v765 = vpow.pop %v764
        %v766 = vmul.f32 %v757, 1.442695
        %v767 = vpow.pop %v766
        %v768 = vmul.f32 %v758, 1.442695
        %v769 = vpow.pop %v768
        %v770 = vmul.f32 %v759, 1.442695
        %v771 = vpow.pop %v770
        %v772 = vmul.f32 %v760, 1.442695
        %v773 = vpow.pop %v772
        %v774 = vmul.f32 %v761, 1.442695
        %v775 = vpow.pop %v774
        %v776 = vmul.f32 %v762, 1.442695
        %v777 = vpow.pop %v776
        %v778 = vmul.f32 %v763, 1.442695
        %v779 = vpow.pop %v778
        %v780 = vadd.f32 %v765, 1.0
        %v781 = vadd.f32 %v767, 1.0
        %v782 = vadd.f32 %v769, 1.0
        %v783 = vadd.f32 %v771, 1.0
        %v784 = vadd.f32 %v773, 1.0
        %v785 = vadd.f32 %v775, 1.0
        %v786 = vadd.f32 %v777, 1.0
        %v787 = vadd.f32 %v779, 1.0
        %v788 = vrcp.pop %v780
        %v789 = vmul.f32 1.0, %v788
        %v790 = vrcp.pop %v781
        %v791 = vmul.f32 1.0, %v790
        %v792 = vrcp.pop %v782
        %v793 = vmul.f32 1.0, %v792
        %v794 = vrcp.pop %v783
        %v795 = vmul.f32 1.0, %v794
        %v796 = vrcp.pop %v784
        %v797 = vmul.f32 1.0, %v796
        %v798 = vrcp.pop %v785
        %v799 = vmul.f32 1.0, %v798
        %v800 = vrcp.pop %v786
        %v801 = vmul.f32 1.0, %v800
        %v802 = vrcp.pop %v787
        %v803 = vmul.f32 1.0, %v802
        %v804 = vmul.f32 %v331, %v789
        %v805 = vmul.f32 %v332, %v791
        %v806 = vmul.f32 %v333, %v793
        %v807 = vmul.f32 %v334, %v795
        %v808 = vmul.f32 %v335, %v797
        %v809 = vmul.f32 %v336, %v799
        %v810 = vmul.f32 %v337, %v801
        %v811 = vmul.f32 %v338, %v803
        %v812 = vmul.f32 %v339, %v365
        %v813 = vmul.f32 %v340, %v366
        %v814 = vmul.f32 %v341, %v367
        %v815 = vmul.f32 %v342, %v368
        %v816 = vmul.f32 %v343, %v369
        %v817 = vmul.f32 %v344, %v370
        %v818 = vmul.f32 %v345, %v371
        %v819 = vmul.f32 %v346, %v372
        %v820 = vadd.f32 %v804, %v812
        %v821 = vadd.f32 %v805, %v813
        %v822 = vadd.f32 %v806, %v814
        %v823 = vadd.f32 %v807, %v815
        %v824 = vadd.f32 %v808, %v816
        %v825 = vadd.f32 %v809, %v817
        %v826 = vadd.f32 %v810, %v818
        %v827 = vadd.f32 %v811, %v819
        %s828 = scalar_lea.vmem %s327, 128 [#allocation11]
        %829 = vst [vmem:[%s828] sm:$0xff] %v820
        %830 = vst [vmem:[%s828 + $0x8] sm:$0xff] %v821
        %831 = vst [vmem:[%s828 + $0x10] sm:$0xff] %v822
        %832 = vst [vmem:[%s828 + $0x18] sm:$0xff] %v823
        %833 = vst [vmem:[%s828 + $0x20] sm:$0xff] %v824
        %834 = vst [vmem:[%s828 + $0x28] sm:$0xff] %v825
        %835 = vst [vmem:[%s828 + $0x30] sm:$0xff] %v826
        %836 = vst [vmem:[%s828 + $0x38] sm:$0xff] %v827
        %s837 = sand.u32 %s146, 1
        %s838 = scalar_lea.sflag [#allocation4], %s837
        %s839 = sand.u32 %s146, 1
        %s840 = smul.addr %s839, 192
        %s841 = scalar_lea.vmem [#allocation11], %s840
        // Predicated region
        $region53: #{tpu_custom_call.1} parent=35 // pred_check
          %p842 = pneg %p156
        $region54: #{tpu_custom_call.1} parent=35 // pred_check_branch
          %844 = sbr.rel (%p842) target = $region56
        $region55: #{tpu_custom_call.1} parent=35 // pred_region
          #allocation15 [shape = 'u32[6]{0}', space=smem, size = 0x18, scoped, tag = 'DMA stride descriptor']
          %s845 = smul.u32 8, %s31
          %s847 = ssub.s32 3072, 3072
          %848 = vsyncadd %s838, %s847
          %s849 = smul.addr %s30, 48
          %s850 = sadd.s32 %s845, %s849
          %s851 = smul.addr %s850, 128
          %s852 = scalar_lea.hbm %s4, %s851
          %s854 = sshll.u32 1, 14
          %s855 = sxor.u32 4294967295, %s854
          %s858 = sshll.u32 7, 18
          %s859 = sxor.u32 4294967295, %s858
          %s860 = sand.u32 0, %s859
          %s862 = sor.u32 %s860, 0
          %s863 = sshll.u32 %s841, 4
          %s864 = int_to_ptr.vmem [resolvable:$true] %s863
          %870 = sst [smem:[#allocation15]] 1024
          %s871 = scalar_lea.smem [#allocation15], 1
          %872 = sst [smem:[%s871]] 2048
          %s873 = scalar_lea.smem [#allocation15], 2
          %874 = sst [smem:[%s873]] 8
          %s875 = scalar_lea.smem [#allocation15], 3
          %876 = sst [smem:[%s875]] 128
          %s877 = scalar_lea.smem [#allocation15], 4
          %878 = sst [smem:[%s877]] 128
          %s879 = scalar_lea.smem [#allocation15], 5
          %880 = sst [smem:[%s879]] 8
          %882 = dma.general %s864, 3072, %s852, %s838, 131072, [#allocation15], %s862, 0
        $region56: #{tpu_custom_call.1} parent=35 // pred_fallthru
          _
      $region36: #{tpu_custom_call.1} parent=5 // pred_fallthru
        _
      %p883 = scmp.le.s32.totalorder 2, %s21
      // Predicated region
      $region57: #{tpu_custom_call.1} parent=5 // pred_check
        %p884 = pneg %p883
      $region58: #{tpu_custom_call.1} parent=5 // pred_check_branch
        %886 = sbr.rel (%p884) target = $region60
      $region59: #{tpu_custom_call.1} parent=5 // pred_region
        %s887 = ssub.s32 %s21, 2
        // Predicated region
        $region61: #{tpu_custom_call.1} parent=59 // pred_check
          %p888 = pneg %p162
        $region62: #{tpu_custom_call.1} parent=59 // pred_check_branch
          %890 = sbr.rel (%p888) target = $region64
        $region63: #{tpu_custom_call.1} parent=59 // pred_region
          %s891 = sand.u32 %s147, 1
          %s892 = scalar_lea.sflag [#allocation4], %s891
          %s893 = sand.u32 %s147, 1
          %s894 = smul.addr %s893, 192
          %s895 = scalar_lea.vmem [#allocation11], %s894
          %896 = dma.done %s892, 3072
        $region64: #{tpu_custom_call.1} parent=59 // pred_fallthru
          _
      $region60: #{tpu_custom_call.1} parent=5 // pred_fallthru
        _
    $region6: #{tpu_custom_call.1} parent=1 // loop_footer
      %s25 = sadd.s32 1, %s21
    $region7: #{tpu_custom_call.1} parent=1 // loop_footer_branch
      %20 = sbr.rel target = $region3
    $region8: #{tpu_custom_call.1} parent=1 // loop_exit
      _
    %897 = vsyncpa [#allocation3], 1
    %s898 = scalar_lea.sflag [#allocation3], 1
    %899 = vsyncpa %s898, 1
    %900 = vsyncpa [#allocation10], 1
    %s901 = scalar_lea.sflag [#allocation10], 1
    %902 = vsyncpa %s901, 1
    %903 = vsyncpa [#allocation4], 1
    %s904 = scalar_lea.sflag [#allocation4], 1
    %905 = vsyncpa %s904, 1
    %906 = vsyncpa [#allocation5], 1
    %s907 = scalar_lea.sflag [#allocation5], 1
    %908 = vsyncpa %s907, 1
    %909 = vsyncpa [#allocation6], 1
    %s910 = scalar_lea.sflag [#allocation6], 1
    %911 = vsyncpa %s910, 1

</llo_original>
